<compile_context>
chip_gen: v5e
topology: v5e:2x2
jax: 0.10.0
libtpu: 0.0.40
codegen_flags: <defaults>
</compile_context>

<pallas_src>
import functools

import jax
import jax.numpy as jnp
from jax.experimental import pallas as pl
from jax.experimental.pallas import tpu as pltpu


# --------------------------------------------------------------------------
# Hardware queries (generation-aware sizing)
# --------------------------------------------------------------------------

_DEF_VMEM_FALLBACK = 64 << 20  # conservative: v7x per-TensorCore capacity


def _vmem_capacity_bytes() -> int:
    try:
        info = pltpu.get_tpu_info()
        cap = getattr(info, "vmem_capacity_bytes", None)
        if cap:
            return int(cap)
    except Exception:
        pass
    return _DEF_VMEM_FALLBACK


def _num_tensorcores() -> int:
    try:
        info = pltpu.get_tpu_info()
        for name in ("num_cores", "num_tensorcores", "tensorcores_per_chip"):
            v = getattr(info, name, None)
            if v:
                return int(v)
    except Exception:
        pass
    # Heuristic: 64 MiB-per-core chips (v7x) have 2 TensorCores per chip.
    return 2 if _vmem_capacity_bytes() <= (96 << 20) else 1


# --------------------------------------------------------------------------
# Kernel
# --------------------------------------------------------------------------

def _mlp_kernel(x_ref, wgu_ref, wd_ref, o_ref, *scratch, block_i):
    """One (token-tile, I-block) step of the fused MLP.

    x_ref   : (tm, H)           activation tile
    wgu_ref : (H, 2*block_i)    [gate block k | up block k] of W_gate_up^T
    wd_ref  : (block_i, H)      block k of W_down^T
    o_ref   : (tm, H)           output tile (resident across the k axis)
    scratch : optionally one (tm, H) f32 accumulator; if absent, the f32
              output tile itself is used as the accumulator.
    """
    k = pl.program_id(1)
    acc_ref = scratch[0] if scratch else o_ref

    @pl.when(k == 0)
    def _():
        acc_ref[...] = jnp.zeros_like(acc_ref)

    x = x_ref[...]                                                     # (tm, H)
    # Fused gate/up projection: a single MXU matmul of width 2*block_i.
    gu = jnp.dot(x, wgu_ref[...], preferred_element_type=jnp.float32)  # (tm, 2*bi)
    gate = gu[:, :block_i]                                             # lane-aligned
    up = gu[:, block_i:]
    h = (gate * jax.nn.sigmoid(gate)) * up                             # SiluAndMul, f32
    # Partial down-projection for this I-block, accumulated in f32.
    acc_ref[...] += jnp.dot(h.astype(x.dtype), wd_ref[...],
                            preferred_element_type=jnp.float32)        # (tm, H)

    if scratch:  # separate accumulator (non-f32 output): cast once at the end
        @pl.when(k == pl.num_programs(1) - 1)
        def _():
            o_ref[...] = acc_ref[...].astype(o_ref.dtype)


# --------------------------------------------------------------------------
# Sizing helpers
# --------------------------------------------------------------------------

def _working_set_bytes(tm, bi, H, x_bytes, w_bytes, o_bytes, acc_in_out):
    """Estimated VMEM working set (double-buffered tiles + temporaries)."""
    ws = 2 * tm * H * x_bytes           # x tile (2 buffers)
    ws += 2 * H * (2 * bi) * w_bytes    # [gate|up] weight slab (2 buffers)
    ws += 2 * bi * H * w_bytes          # W_down slab (2 buffers)
    ws += 2 * tm * H * o_bytes          # output tile (2 buffers)
    if not acc_in_out:
        ws += tm * H * 4                # f32 accumulator scratch
    # in-kernel temporaries: f32 gate_up tile + cast h tile (upper bound)
    ws += tm * (2 * bi) * 4 + tm * bi * max(x_bytes, 2)
    return ws


def auto_block_i(H, I, *, x_dtype, w_dtype, out_dtype=None,
                 tile_m=512, max_tokens=512):
    """Pick the I-block size: full residency (bi == I) when it fits VMEM,
    otherwise the largest MXU-friendly slab that fits."""
    out_dtype = out_dtype if out_dtype is not None else x_dtype
    xb = jnp.dtype(x_dtype).itemsize
    wb = jnp.dtype(w_dtype).itemsize
    ob = jnp.dtype(out_dtype).itemsize
    acc_in_out = jnp.dtype(out_dtype) == jnp.dtype(jnp.float32)
    tm = min(tile_m, max_tokens)
    budget = _vmem_capacity_bytes() - (12 << 20)   # headroom for Mosaic scratch
    candidates = [I] + [b for b in (512, 384, 256, 128) if b < I and I % b == 0]
    for bi in candidates:
        if _working_set_bytes(tm, bi, H, xb, wb, ob, acc_in_out) <= budget:
            return bi
    return candidates[-1]


def prepare_qwen2_moe_mlp_weights(w_gate_up, w_down, *, block_i):
    """One-time (weight-load-time) re-layout. NOT on the forward path.

    w_gate_up : (2*I, H)  PyTorch MergedColumnParallelLinear weight
    w_down    : (H, I)    PyTorch RowParallelLinear weight

    Returns:
      w_gu_t : (H, 2*I) columns arranged [gate_0|up_0|gate_1|up_1|...] so grid
               step k reads one contiguous (H, 2*block_i) slab
      w_dn_t : (I, H)   W_down transposed to input-major
    """
    two_I, H = w_gate_up.shape
    I = two_I // 2
    bi = block_i
    assert I % bi == 0, "intermediate_size must be a multiple of block_i"
    nk = I // bi
    w_gate_t = jnp.transpose(w_gate_up[:I, :])     # (H, I)
    w_up_t = jnp.transpose(w_gate_up[I:, :])       # (H, I)
    w_gu_t = jnp.stack(
        [w_gate_t.reshape(H, nk, bi), w_up_t.reshape(H, nk, bi)], axis=2
    ).reshape(H, 2 * I)
    w_dn_t = jnp.transpose(w_down)                 # (I, H)
    return w_gu_t, w_dn_t


# --------------------------------------------------------------------------
# Forward
# --------------------------------------------------------------------------

def qwen2_moe_mlp(x, w_gu_t, w_dn_t, *, block_i, tile_m=512, out_dtype=None):
    """
    x      : (T, H)
    w_gu_t : (H, 2*I)  from prepare_qwen2_moe_mlp_weights (same block_i)
    w_dn_t : (I, H)
    returns: (T, H)
    """
    T, H = x.shape
    I, H2 = w_dn_t.shape
    assert H2 == H and w_gu_t.shape == (H, 2 * I)
    bi = block_i
    assert I % bi == 0, "block_i must divide intermediate_size"
    out_dtype = out_dtype if out_dtype is not None else x.dtype
    acc_in_out = jnp.dtype(out_dtype) == jnp.dtype(jnp.float32)

    # ---- token tile: large enough to be compute-bound, 16-row aligned ----
    tm = min(tile_m, T)
    if tm < T:
        tm = max(16, (tm // 16) * 16)
    # v7x megacore: keep >= 2 tiles on the "parallel" axis so both TCs work.
    if _num_tensorcores() >= 2 and pl.cdiv(T, tm) < 2 and T >= 32:
        tm = max(16, ((pl.cdiv(T, 2) + 15) // 16) * 16)

    n_k = I // bi
    grid = (pl.cdiv(T, tm), n_k)

    # ---- generation-aware VMEM limit (never below the working set) ----
    xb = jnp.dtype(x.dtype).itemsize
    wb = jnp.dtype(w_gu_t.dtype).itemsize
    ob = jnp.dtype(out_dtype).itemsize
    needed = _working_set_bytes(tm, bi, H, xb, wb, ob, acc_in_out)
    vmem_cap = _vmem_capacity_bytes()
    budget = vmem_cap - (8 << 20)
    vmem_limit = max(needed, min(int(needed * 1.25) + (4 << 20), budget))
    vmem_limit = max(vmem_limit, min(32 << 20, budget))
    vmem_limit = int(min(vmem_limit, vmem_cap))

    kernel = functools.partial(_mlp_kernel, block_i=bi)
    scratch = [] if acc_in_out else [pltpu.VMEM((tm, H), jnp.float32)]

    return pl.pallas_call(
        kernel,
        out_shape=jax.ShapeDtypeStruct((T, H), out_dtype),
        grid_spec=pltpu.PrefetchScalarGridSpec(
            num_scalar_prefetch=0,
            grid=grid,
            in_specs=[
                pl.BlockSpec((tm, H), lambda i, k: (i, 0)),       # x tile
                pl.BlockSpec((H, 2 * bi), lambda i, k: (0, k)),   # [gate_k|up_k]
                pl.BlockSpec((bi, H), lambda i, k: (k, 0)),       # W_down slab
            ],
            out_specs=pl.BlockSpec((tm, H), lambda i, k: (i, 0)),
            scratch_shapes=scratch,
        ),
        compiler_params=pltpu.CompilerParams(
            dimension_semantics=("parallel", "arbitrary"),
            vmem_limit_bytes=vmem_limit,
        ),
    )(x, w_gu_t, w_dn_t)


# --------------------------------------------------------------------------
# Reference & test
# --------------------------------------------------------------------------

def _reference(x, w_gate_up, w_down):
    I = w_gate_up.shape[0] // 2
    gate_up = x @ w_gate_up.T
    gate, up = gate_up[:, :I], gate_up[:, I:]
    h = (gate * jax.nn.sigmoid(gate)) * up
    return h @ w_down.T


if __name__ == "__main__":
    # Small, TPU-tile-friendly shapes consistent with the module forward.
    T = 64       # tokens
    H = 128      # hidden_size
    I = 256      # intermediate_size

    key = jax.random.PRNGKey(0)
    k_x, k_gu, k_d = jax.random.split(key, 3)

    x = jax.random.normal(k_x, (T, H), dtype=jnp.float32)
    # PyTorch parameter shapes (bias=False):
    #   gate_up_proj.weight : (2*I, H), down_proj.weight : (H, I)
    w_gate_up = jax.random.normal(k_gu, (2 * I, H), dtype=jnp.float32) * 0.02
    w_down = jax.random.normal(k_d, (H, I), dtype=jnp.float32) * 0.02

    ref = _reference(x, w_gate_up, w_down)

    # 1) f32, auto block_i (small shapes -> bi == I: weights fully VMEM-resident,
    #    no scratch accumulator, accumulate directly into the f32 output).
    bi_auto = auto_block_i(H, I, x_dtype=x.dtype, w_dtype=w_gate_up.dtype,
                           max_tokens=T)
    w_gu_t, w_dn_t = prepare_qwen2_moe_mlp_weights(w_gate_up, w_down,
                                                   block_i=bi_auto)
    out = jax.block_until_ready(qwen2_moe_mlp(x, w_gu_t, w_dn_t,
                                              block_i=bi_auto))
    assert out.shape == (T, H)
    err = float(jnp.max(jnp.abs(out - ref)))
    assert jnp.allclose(out, ref, atol=1e-4, rtol=1e-4), \
        f"f32/auto mismatch vs reference: {err:.3e}"

    # 2) f32, streamed I-reduction (block_i=128 -> k grid of 2, 2 token tiles).
    w_gu_s, w_dn_s = prepare_qwen2_moe_mlp_weights(w_gate_up, w_down,
                                                   block_i=128)
    out2 = jax.block_until_ready(qwen2_moe_mlp(x, w_gu_s, w_dn_s,
                                               block_i=128, tile_m=32))
    err2 = float(jnp.max(jnp.abs(out2 - ref)))
    assert jnp.allclose(out2, ref, atol=1e-4, rtol=1e-4), \
        f"f32/streamed mismatch vs reference: {err2:.3e}"

    # 3) bf16 activations/weights (production dtype): f32 scratch accumulator.
    xb = x.astype(jnp.bfloat16)
    out3 = jax.block_until_ready(
        qwen2_moe_mlp(xb, w_gu_s.astype(jnp.bfloat16),
                      w_dn_s.astype(jnp.bfloat16), block_i=128))
    ref_b = _reference(xb.astype(jnp.float32),
                       w_gate_up.astype(jnp.bfloat16).astype(jnp.float32),
                       w_down.astype(jnp.bfloat16).astype(jnp.float32))
    err3 = float(jnp.max(jnp.abs(out3.astype(jnp.float32) - ref_b)))
    assert err3 < 2e-2, f"bf16 mismatch vs reference: {err3:.3e}"

    print("KERNEL_OK")
</pallas_src>

<mosaic_0001>
module attributes {stable_mosaic.version = 11 : i64} {
  func.func @_mlp_kernel(%arg0: i32, %arg1: i32, %arg2: memref<32x128xf32, #tpu.memory_space<vmem>>, %arg3: memref<128x512xf32, #tpu.memory_space<vmem>>, %arg4: memref<256x128xf32, #tpu.memory_space<vmem>>, %arg5: memref<32x128xf32, #tpu.memory_space<vmem>>) attributes {dimension_semantics = [#tpu.dimension_semantics<parallel>, #tpu.dimension_semantics<arbitrary>], iteration_bounds = array<i64: 2, 1>, scalar_prefetch = 0 : i64, scratch_operands = 0 : i64, tpu.core_type = #tpu.core_type<tc>, window_params = [{transform_indices = @transform_0, window_bounds = array<i64: 32, 128>}, {transform_indices = @transform_1, window_bounds = array<i64: 128, 512>}, {transform_indices = @transform_2, window_bounds = array<i64: 256, 128>}, {transform_indices = @transform_3, window_bounds = array<i64: 32, 128>}]} {
    %c0_i32 = arith.constant 0 : i32
    %0 = arith.cmpi eq, %arg1, %c0_i32 : i32
    %1 = arith.extui %0 : i1 to i32
    %c0_i32_0 = arith.constant 0 : i32
    %2 = arith.cmpi ne, %1, %c0_i32_0 : i32
    scf.if %2 {
      %cst_12 = arith.constant 0.000000e+00 : f32
      %20 = vector.broadcast %cst_12 : f32 to vector<32x128xf32>
      %c0_13 = arith.constant 0 : index
      %c0_14 = arith.constant 0 : index
      %21 = vector.load %arg5[%c0_13, %c0_14] : memref<32x128xf32, #tpu.memory_space<vmem>>, vector<32x128xf32>
      tpu.vector_store %arg5[%c0_13, %c0_14], %20 {strides = array<i32>} : memref<32x128xf32, #tpu.memory_space<vmem>>, vector<32x128xf32>,
    } else {
    }
    %c0 = arith.constant 0 : index
    %c0_1 = arith.constant 0 : index
    %3 = vector.load %arg2[%c0, %c0_1] : memref<32x128xf32, #tpu.memory_space<vmem>>, vector<32x128xf32>
    %c0_2 = arith.constant 0 : index
    %c0_3 = arith.constant 0 : index
    %4 = vector.load %arg3[%c0_2, %c0_3] : memref<128x512xf32, #tpu.memory_space<vmem>>, vector<128x512xf32>
    %cst = arith.constant dense<0.000000e+00> : vector<32x512xf32>
    %5 = tpu.matmul %3, %4, %cst {dimension_numbers = #tpu.dot_dimension_numbers<[1], [0], [0], [1], [0, 0, 1, 1], [], []>} : vector<32x128xf32>, vector<128x512xf32>, vector<32x512xf32> -> vector<32x512xf32>
    %6 = vector.extract_strided_slice %5 {offsets = [0, 0], sizes = [32, 256], strides = [1, 1]} : vector<32x512xf32> to vector<32x256xf32>
    %7 = vector.extract_strided_slice %5 {offsets = [0, 256], sizes = [32, 256], strides = [1, 1]} : vector<32x512xf32> to vector<32x256xf32>
    %8 = arith.negf %6 : vector<32x256xf32>
    %9 = math.exp %8 : vector<32x256xf32>
    %cst_4 = arith.constant 1.000000e+00 : f32
    %10 = vector.broadcast %cst_4 : f32 to vector<32x256xf32>
    %11 = arith.addf %10, %9 : vector<32x256xf32>
    %12 = arith.divf %10, %11 : vector<32x256xf32>
    %13 = arith.mulf %6, %12 : vector<32x256xf32>
    %14 = arith.mulf %13, %7 : vector<32x256xf32>
    %c0_5 = arith.constant 0 : index
    %c0_6 = arith.constant 0 : index
    %15 = vector.load %arg5[%c0_5, %c0_6] : memref<32x128xf32, #tpu.memory_space<vmem>>, vector<32x128xf32>
    %c0_7 = arith.constant 0 : index
    %c0_8 = arith.constant 0 : index
    %16 = vector.load %arg4[%c0_7, %c0_8] : memref<256x128xf32, #tpu.memory_space<vmem>>, vector<256x128xf32>
    %cst_9 = arith.constant dense<0.000000e+00> : vector<32x128xf32>
    %17 = tpu.matmul %14, %16, %cst_9 {dimension_numbers = #tpu.dot_dimension_numbers<[1], [0], [0], [1], [0, 0, 1, 1], [], []>} : vector<32x256xf32>, vector<256x128xf32>, vector<32x128xf32> -> vector<32x128xf32>
    %18 = arith.addf %15, %17 : vector<32x128xf32>
    %c0_10 = arith.constant 0 : index
    %c0_11 = arith.constant 0 : index
    %19 = vector.load %arg5[%c0_10, %c0_11] : memref<32x128xf32, #tpu.memory_space<vmem>>, vector<32x128xf32>
    tpu.vector_store %arg5[%c0_10, %c0_11], %18 {strides = array<i32>} : memref<32x128xf32, #tpu.memory_space<vmem>>, vector<32x128xf32>,
    return
  }
  func.func @transform_0(%arg0: i32, %arg1: i32) -> (i32, i32) {
    %c0_i32 = arith.constant 0 : i32
    %c0_i32_0 = arith.constant 0 : i32
    return %arg0, %c0_i32 : i32, i32
  }
  func.func @transform_1(%arg0: i32, %arg1: i32) -> (i32, i32) {
    %c0_i32 = arith.constant 0 : i32
    %c0_i32_0 = arith.constant 0 : i32
    return %c0_i32, %arg1 : i32, i32
  }
  func.func @transform_2(%arg0: i32, %arg1: i32) -> (i32, i32) {
    %c0_i32 = arith.constant 0 : i32
    %c0_i32_0 = arith.constant 0 : i32
    return %arg1, %c0_i32 : i32, i32
  }
  func.func @transform_3(%arg0: i32, %arg1: i32) -> (i32, i32) {
    %c0_i32 = arith.constant 0 : i32
    %c0_i32_0 = arith.constant 0 : i32
    return %arg0, %c0_i32 : i32, i32
  }
}

</mosaic_0001>

<llo_original>
// kernel: tpu_custom_call.1
$region0: #{tpu_custom_call.1}
  #allocation0 [shape = 'u32[]', space=smem, size = 0x4, offset = 0x4, fixed_abs, tag = 'smem constant byte address 0x4 - core index']
  #allocation1 [shape = 'u32[72,128]{1,0:T(1,128)}', space=vmem, size = 0x9000, scoped, tag = 'internal scratch']
  %s0 = inlined_call_operand.hbm [shape: f32[64,128], index: 0, kind: input, shape index: {}]
  %s1 = inlined_call_operand.hbm [shape: f32[128,512], index: 1, kind: input, shape index: {}]
  %s2 = inlined_call_operand.hbm [shape: f32[256,128], index: 2, kind: input, shape index: {}]
  %s3 = inlined_call_operand.hbm [shape: f32[64,128], index: 3, kind: output, shape index: {}]
  %s4 = sld [smem:[#allocation0]]
  $region61: #{tpu_custom_call.1} parent=0
    _
  %s6 = ssub.s32 1, %s4
  %s7 = scalar_select 0, %s6, %s4
  $region1: #{tpu_custom_call.1} parent=0
    #allocation2 [shape = 'u8[32768]{0}', space=vmem, size = 0x8000, scoped, tag = 'input window, operand 0']
    #allocation3 [shape = 's32[2]{0}', space=sflag, size = 0x8, scoped, tag = 'scoped memory for tpu_custom_call.1']
    #allocation4 [shape = 's32[2]{0}', space=sflag, size = 0x8, scoped, tag = 'scoped memory for tpu_custom_call.1']
    #allocation5 [shape = 'u8[262144]{0}', space=vmem, size = 0x40000, scoped, tag = 'input window, operand 1, single buffered']
    #allocation6 [shape = 's32[1]{0}', space=sflag, size = 0x4, scoped, tag = 'scoped memory for tpu_custom_call.1']
    #allocation7 [shape = 'u8[131072]{0}', space=vmem, size = 0x20000, scoped, tag = 'input window, operand 2, single buffered']
    #allocation8 [shape = 'u8[32768]{0}', space=vmem, size = 0x8000, scoped, tag = 'output window, operand 0']
    %8 = vsyncpa [#allocation3], 0
    %s9 = scalar_lea.sflag [#allocation3], 1
    %10 = vsyncpa %s9, 0
    %11 = vsyncpa [#allocation6], 0
    %12 = vsyncpa [#allocation4], 0
    %s13 = scalar_lea.sflag [#allocation4], 1
    %14 = vsyncpa %s13, 0
    loop: start=0, step=1, limit=4
    $region2: #{tpu_custom_call.1} parent=1 // loop_pre_header
      _
    $region3: #{tpu_custom_call.1} parent=1 // loop_header
      %s16 = sphi 0, %s20
      %p17 = scmp.ge.s32.totalorder %s16, 4
      %s23 = sphi 0, %s35
      %s24 = sphi 0, %s31
      %s25 = sphi 0, %s23
      %s26 = sphi 0, %s24
      %s27 = sphi 0, %s25
      %s28 = sphi 0, %s26
      %s38 = sphi 0, %s40
      %s41 = sphi 0, %s38
      %s42 = sphi 0, %s41
      %s58 = sphi 0, %s42
      %s64 = sphi 0, %s66
      %s67 = sphi 0, %s64
      %s68 = sphi 0, %s67
      %s84 = sphi 0, %s68
      %s90 = sphi 0, %s92
      %s93 = sphi 0, %s90
      %s94 = sphi 0, %s93
      %s110 = sphi 0, %s94
      %s116 = sphi 0, %s118
      %s119 = sphi 0, %s116
      %s120 = sphi 0, %s119
      %s136 = sphi 0, %s120
    $region4: #{tpu_custom_call.1} parent=1 // loop_header_branch
      %19 = sbr.rel (%p17) target = $region8
    $region5: #{tpu_custom_call.1} parent=1 // loop_body
      %s21 = ssub.s32 %s16, 1
      %s22 = ssub.s32 %s16, 2
      %s29 = sadd.s32 1, %s24
      %p30 = scmp.ge.s32.totalorder %s29, 1
      %s31 = scalar_select %p30, 0, %s29
      %s32 = sadd.s32 1, %s23
      %s33 = scalar_select %p30, %s32, %s23
      %p34 = scmp.ge.s32.totalorder %s33, 2
      %s35 = scalar_select %p34, 0, %s33
      %s36 = ssub.s32 %s23, %s35
      %p37 = scmp.eq.s32.totalorder %s36, 0
      %s39 = sadd.s32 %s38, 1
      %s40 = scalar_select %p37, %s38, %s39
      %p43 = pneg %p37
      %p44 = scmp.eq.s32.totalorder %s16, 1
      %p45 = por %p43, %p44
      %p46 = scmp.ne.s32.totalorder %s38, %s41
      %p47 = scmp.eq.s32.totalorder %s16, 0
      %p48 = por %p46, %p47
      %p49 = scmp.ne.s32.totalorder %s38, %s41
      %p50 = scmp.eq.s32.totalorder %s21, 1
      %p51 = por %p49, %p50
      %p52 = scmp.ne.s32.totalorder %s41, %s42
      %p53 = scmp.eq.s32.totalorder %s21, 0
      %p54 = por %p52, %p53
      %p55 = scmp.ne.s32.totalorder %s41, %s42
      %p56 = scmp.eq.s32.totalorder %s22, 1
      %p57 = por %p55, %p56
      %p59 = scmp.ne.s32.totalorder %s42, %s58
      %p60 = scmp.eq.s32.totalorder %s22, 0
      %p61 = por %p59, %p60
      %s62 = ssub.s32 %s24, %s31
      %p63 = scmp.eq.s32.totalorder %s62, 0
      %s65 = sadd.s32 %s64, 1
      %s66 = scalar_select %p63, %s64, %s65
      %p69 = pneg %p63
      %p70 = scmp.eq.s32.totalorder %s16, 1
      %p71 = por %p69, %p70
      %p72 = scmp.ne.s32.totalorder %s64, %s67
      %p73 = scmp.eq.s32.totalorder %s16, 0
      %p74 = por %p72, %p73
      %p75 = scmp.ne.s32.totalorder %s64, %s67
      %p76 = scmp.eq.s32.totalorder %s21, 1
      %p77 = por %p75, %p76
      %p78 = scmp.ne.s32.totalorder %s67, %s68
      %p79 = scmp.eq.s32.totalorder %s21, 0
      %p80 = por %p78, %p79
      %p81 = scmp.ne.s32.totalorder %s67, %s68
      %p82 = scmp.eq.s32.totalorder %s22, 1
      %p83 = por %p81, %p82
      %p85 = scmp.ne.s32.totalorder %s68, %s84
      %p86 = scmp.eq.s32.totalorder %s22, 0
      %p87 = por %p85, %p86
      %s88 = ssub.s32 %s24, %s31
      %p89 = scmp.eq.s32.totalorder %s88, 0
      %s91 = sadd.s32 %s90, 1
      %s92 = scalar_select %p89, %s90, %s91
      %p95 = pneg %p89
      %p96 = scmp.eq.s32.totalorder %s16, 1
      %p97 = por %p95, %p96
      %p98 = scmp.ne.s32.totalorder %s90, %s93
      %p99 = scmp.eq.s32.totalorder %s16, 0
      %p100 = por %p98, %p99
      %p101 = scmp.ne.s32.totalorder %s90, %s93
      %p102 = scmp.eq.s32.totalorder %s21, 1
      %p103 = por %p101, %p102
      %p104 = scmp.ne.s32.totalorder %s93, %s94
      %p105 = scmp.eq.s32.totalorder %s21, 0
      %p106 = por %p104, %p105
      %p107 = scmp.ne.s32.totalorder %s93, %s94
      %p108 = scmp.eq.s32.totalorder %s22, 1
      %p109 = por %p107, %p108
      %p111 = scmp.ne.s32.totalorder %s94, %s110
      %p112 = scmp.eq.s32.totalorder %s22, 0
      %p113 = por %p111, %p112
      %s114 = ssub.s32 %s23, %s35
      %p115 = scmp.eq.s32.totalorder %s114, 0
      %s117 = sadd.s32 %s116, 1
      %s118 = scalar_select %p115, %s116, %s117
      %p121 = pneg %p115
      %p122 = scmp.eq.s32.totalorder %s16, 1
      %p123 = por %p121, %p122
      %p124 = scmp.ne.s32.totalorder %s116, %s119
      %p125 = scmp.eq.s32.totalorder %s16, 0
      %p126 = por %p124, %p125
      %p127 = scmp.ne.s32.totalorder %s116, %s119
      %p128 = scmp.eq.s32.totalorder %s21, 1
      %p129 = por %p127, %p128
      %p130 = scmp.ne.s32.totalorder %s119, %s120
      %p131 = scmp.eq.s32.totalorder %s21, 0
      %p132 = por %p130, %p131
      %p133 = scmp.ne.s32.totalorder %s119, %s120
      %p134 = scmp.eq.s32.totalorder %s22, 1
      %p135 = por %p133, %p134
      %p137 = scmp.ne.s32.totalorder %s120, %s136
      %p138 = scmp.eq.s32.totalorder %s22, 0
      %p139 = por %p137, %p138
      %p140 = scmp.le.s32.totalorder 1, %s16
      %p141 = scmp.lt.s32.totalorder %s16, 3
      %p142 = pnand %p140, %p141
      %p143 = pneg %p142
      // Predicated region
      $region9: #{tpu_custom_call.1} parent=5 // pred_check
        _
      $region10: #{tpu_custom_call.1} parent=5 // pred_check_branch
        %145 = sbr.rel (%p142) target = $region12
      $region11: #{tpu_custom_call.1} parent=5 // pred_region
        %s146 = ssub.s32 %s16, 1
        // Predicated region
        $region13: #{tpu_custom_call.1} parent=11 // pred_check
          %p147 = pneg %p80
        $region14: #{tpu_custom_call.1} parent=11 // pred_check_branch
          %149 = sbr.rel (%p147) target = $region16
        $region15: #{tpu_custom_call.1} parent=11 // pred_region
          %s150 = smul.u32 4, %s26
          %152 = vsyncadd [#allocation6], 0
          %s153 = smul.addr %s150, 8
          %s154 = scalar_lea.hbm %s1, %s153
          %s155 = sshll.u32 %s154, 4
          %s156 = int_to_ptr.hbm [resolvable:$true] %s155
          %s157 = sshll.u32 [#allocation5], 4
          %s158 = int_to_ptr.vmem [resolvable:$true] %s157
          %163 = dma.hbm_to_vmem [thread:$0]  %s156, 8192, %s158, [#allocation6], 512, 512, 32
        $region16: #{tpu_custom_call.1} parent=11 // pred_fallthru
          _
        // Predicated region
        $region17: #{tpu_custom_call.1} parent=11 // pred_check
          %p164 = pneg %p106
        $region18: #{tpu_custom_call.1} parent=11 // pred_check_branch
          %166 = sbr.rel (%p164) target = $region20
        $region19: #{tpu_custom_call.1} parent=11 // pred_region
          %s167 = smul.u32 32, %s26
          %169 = vsyncadd [#allocation6], 0
          %s170 = smul.addr %s167, 8
          %s171 = scalar_lea.hbm %s2, %s170
          %s172 = sshll.u32 %s171, 4
          %s173 = int_to_ptr.hbm [resolvable:$true] %s172
          %s174 = sshll.u32 [#allocation7], 4
          %s175 = int_to_ptr.vmem [resolvable:$true] %s174
          %180 = dma.hbm_to_vmem [thread:$0]  %s173, 4096, %s175, [#allocation6], 128, 128, 8
        $region20: #{tpu_custom_call.1} parent=11 // pred_fallthru
          _
      $region12: #{tpu_custom_call.1} parent=5 // pred_fallthru
        _
      %p181 = scmp.lt.s32.totalorder %s16, 2
      // Predicated region
      $region21: #{tpu_custom_call.1} parent=5 // pred_check
        %p182 = pneg %p181
      $region22: #{tpu_custom_call.1} parent=5 // pred_check_branch
        %184 = sbr.rel (%p182) target = $region24
      $region23: #{tpu_custom_call.1} parent=5 // pred_region
        // Predicated region
        $region25: #{tpu_custom_call.1} parent=23 // pred_check
          %p185 = pneg %p48
        $region26: #{tpu_custom_call.1} parent=23 // pred_check_branch
          %187 = sbr.rel (%p185) target = $region28
        $region27: #{tpu_custom_call.1} parent=23 // pred_region
          %s188 = sand.u32 %s38, 1
          %s189 = scalar_lea.sflag [#allocation3], %s188
          %s190 = sand.u32 %s38, 1
          %s191 = smul.addr %s190, 32
          %s192 = scalar_lea.vmem [#allocation2], %s191
          %s193 = smul.u32 4, %s23
          %195 = vsyncadd %s189, 0
          %s196 = smul.addr %s193, 8
          %s197 = scalar_lea.hbm %s0, %s196
          %s198 = sshll.u32 %s197, 4
          %s199 = int_to_ptr.hbm [resolvable:$true] %s198
          %s200 = sshll.u32 %s192, 4
          %s201 = int_to_ptr.vmem [resolvable:$true] %s200
          %206 = dma.hbm_to_vmem [thread:$0]  %s199, 512, %s201, %s189, 128, 128, 8
        $region28: #{tpu_custom_call.1} parent=23 // pred_fallthru
          _
      $region24: #{tpu_custom_call.1} parent=5 // pred_fallthru
        _
      %p207 = scmp.le.s32.totalorder 1, %s16
      %p208 = scmp.lt.s32.totalorder %s16, 3
      %p209 = pnand %p207, %p208
      %p210 = pneg %p209
      // Predicated region
      $region29: #{tpu_custom_call.1} parent=5 // pred_check
        _
      $region30: #{tpu_custom_call.1} parent=5 // pred_check_branch
        %212 = sbr.rel (%p209) target = $region32
      $region31: #{tpu_custom_call.1} parent=5 // pred_region
        %s213 = ssub.s32 %s16, 1
        %s214 = sand.u32 %s41, 1
        %s215 = scalar_lea.sflag [#allocation3], %s214
        %s216 = sand.u32 %s41, 1
        %s217 = smul.addr %s216, 32
        %s218 = scalar_lea.vmem [#allocation2], %s217
        // Predicated region
        $region33: #{tpu_custom_call.1} parent=31 // pred_check
          %p219 = pneg %p54
        $region34: #{tpu_custom_call.1} parent=31 // pred_check_branch
          %221 = sbr.rel (%p219) target = $region36
        $region35: #{tpu_custom_call.1} parent=31 // pred_region
          %223 = dma.done %s215, 512
        $region36: #{tpu_custom_call.1} parent=31 // pred_fallthru
          _
        // Predicated region
        $region37: #{tpu_custom_call.1} parent=31 // pred_check
          %p224 = pneg %p80
        $region38: #{tpu_custom_call.1} parent=31 // pred_check_branch
          %226 = sbr.rel (%p224) target = $region40
        $region39: #{tpu_custom_call.1} parent=31 // pred_region
          %228 = dma.done [#allocation6], 8192
        $region40: #{tpu_custom_call.1} parent=31 // pred_fallthru
          _
        // Predicated region
        $region41: #{tpu_custom_call.1} parent=31 // pred_check
          %p229 = pneg %p106
        $region42: #{tpu_custom_call.1} parent=31 // pred_check_branch
          %231 = sbr.rel (%p229) target = $region44
        $region43: #{tpu_custom_call.1} parent=31 // pred_region
          %233 = dma.done [#allocation6], 4096
        $region44: #{tpu_custom_call.1} parent=31 // pred_fallthru
          _
        %s234 = sand.u32 %s41, 1
        %s235 = scalar_lea.sflag [#allocation3], %s234
        %s236 = sand.u32 %s41, 1
        %s237 = smul.addr %s236, 32
        %s238 = scalar_lea.vmem [#allocation2], %s237
        %p239 = pneg %p54
        %p240 = pneg %p51
        %p241 = pneg %p80
        %p242 = pneg %p77
        %p243 = pneg %p106
        %p244 = pneg %p103
        %p245 = pneg %p132
        %p246 = pneg %p129
        %s247 = sand.u32 %s119, 1
        %s248 = scalar_lea.sflag [#allocation4], %s247
        %s249 = sand.u32 %s119, 1
        %s250 = smul.addr %s249, 32
        %s251 = scalar_lea.vmem [#allocation8], %s250
        %s252 = smul.u32 4, %s25
        %s253 = smul.u32 4, %s26
        %s254 = smul.u32 32, %s26
        %s255 = smul.u32 4, %s25
        %p256 = scmp.eq.s32.totalorder %s26, 0
        // Predicated region
        $region45: #{tpu_custom_call.1} parent=31 // pred_check
          %p257 = pneg %p256
        $region46: #{tpu_custom_call.1} parent=31 // pred_check_branch
          %259 = sbr.rel (%p257) target = $region48
        $region47: #{tpu_custom_call.1} parent=31 // pred_region
          %260 = vst [vmem:[%s251] sm:$0xff] 0.0
          %261 = vst [vmem:[%s251 + $0x8] sm:$0xff] 0.0
          %262 = vst [vmem:[%s251 + $0x10] sm:$0xff] 0.0
          %263 = vst [vmem:[%s251 + $0x18] sm:$0xff] 0.0
        $region48: #{tpu_custom_call.1} parent=31 // pred_fallthru
          _
        %v264 = vld [vmem:[%s218] sm:$0xff]
        %v265 = vld [vmem:[%s218 + $0x8] sm:$0xff]
        %v266 = vld [vmem:[%s218 + $0x10] sm:$0xff]
        %v267 = vld [vmem:[%s218 + $0x18] sm:$0xff]
        %v268 = vld [vmem:[#allocation5] sm:$0xff]
        %v269 = vld [vmem:[#allocation5 + $0x8] sm:$0xff]
        %v270 = vld [vmem:[#allocation5 + $0x10] sm:$0xff]
        %v271 = vld [vmem:[#allocation5 + $0x18] sm:$0xff]
        %v272 = vld [vmem:[#allocation5 + $0x20] sm:$0xff]
        %v273 = vld [vmem:[#allocation5 + $0x28] sm:$0xff]
        %v274 = vld [vmem:[#allocation5 + $0x30] sm:$0xff]
        %v275 = vld [vmem:[#allocation5 + $0x38] sm:$0xff]
        %v276 = vld [vmem:[#allocation5 + $0x40] sm:$0xff]
        %v277 = vld [vmem:[#allocation5 + $0x48] sm:$0xff]
        %v278 = vld [vmem:[#allocation5 + $0x50] sm:$0xff]
        %v279 = vld [vmem:[#allocation5 + $0x58] sm:$0xff]
        %v280 = vld [vmem:[#allocation5 + $0x60] sm:$0xff]
        %v281 = vld [vmem:[#allocation5 + $0x68] sm:$0xff]
        %v282 = vld [vmem:[#allocation5 + $0x70] sm:$0xff]
        %v283 = vld [vmem:[#allocation5 + $0x78] sm:$0xff]
        %v284 = vld [vmem:[#allocation5 + $0x80] sm:$0xff]
        %v285 = vld [vmem:[#allocation5 + $0x88] sm:$0xff]
        %v286 = vld [vmem:[#allocation5 + $0x90] sm:$0xff]
        %v287 = vld [vmem:[#allocation5 + $0x98] sm:$0xff]
        %v288 = vld [vmem:[#allocation5 + $0xa0] sm:$0xff]
        %v289 = vld [vmem:[#allocation5 + $0xa8] sm:$0xff]
        %v290 = vld [vmem:[#allocation5 + $0xb0] sm:$0xff]
        %v291 = vld [vmem:[#allocation5 + $0xb8] sm:$0xff]
        %v292 = vld [vmem:[#allocation5 + $0xc0] sm:$0xff]
        %v293 = vld [vmem:[#allocation5 + $0xc8] sm:$0xff]
        %v294 = vld [vmem:[#allocation5 + $0xd0] sm:$0xff]
        %v295 = vld [vmem:[#allocation5 + $0xd8] sm:$0xff]
        %v296 = vld [vmem:[#allocation5 + $0xe0] sm:$0xff]
        %v297 = vld [vmem:[#allocation5 + $0xe8] sm:$0xff]
        %v298 = vld [vmem:[#allocation5 + $0xf0] sm:$0xff]
        %v299 = vld [vmem:[#allocation5 + $0xf8] sm:$0xff]
        %v300 = vld [vmem:[#allocation5 + $0x100] sm:$0xff]
        %v301 = vld [vmem:[#allocation5 + $0x108] sm:$0xff]
        %v302 = vld [vmem:[#allocation5 + $0x110] sm:$0xff]
        %v303 = vld [vmem:[#allocation5 + $0x118] sm:$0xff]
        %v304 = vld [vmem:[#allocation5 + $0x120] sm:$0xff]
        %v305 = vld [vmem:[#allocation5 + $0x128] sm:$0xff]
        %v306 = vld [vmem:[#allocation5 + $0x130] sm:$0xff]
        %v307 = vld [vmem:[#allocation5 + $0x138] sm:$0xff]
        %v308 = vld [vmem:[#allocation5 + $0x140] sm:$0xff]
        %v309 = vld [vmem:[#allocation5 + $0x148] sm:$0xff]
        %v310 = vld [vmem:[#allocation5 + $0x150] sm:$0xff]
        %v311 = vld [vmem:[#allocation5 + $0x158] sm:$0xff]
        %v312 = vld [vmem:[#allocation5 + $0x160] sm:$0xff]
        %v313 = vld [vmem:[#allocation5 + $0x168] sm:$0xff]
        %v314 = vld [vmem:[#allocation5 + $0x170] sm:$0xff]
        %v315 = vld [vmem:[#allocation5 + $0x178] sm:$0xff]
        %v316 = vld [vmem:[#allocation5 + $0x180] sm:$0xff]
        %v317 = vld [vmem:[#allocation5 + $0x188] sm:$0xff]
        %v318 = vld [vmem:[#allocation5 + $0x190] sm:$0xff]
        %v319 = vld [vmem:[#allocation5 + $0x198] sm:$0xff]
        %v320 = vld [vmem:[#allocation5 + $0x1a0] sm:$0xff]
        %v321 = vld [vmem:[#allocation5 + $0x1a8] sm:$0xff]
        %v322 = vld [vmem:[#allocation5 + $0x1b0] sm:$0xff]
        %v323 = vld [vmem:[#allocation5 + $0x1b8] sm:$0xff]
        %v324 = vld [vmem:[#allocation5 + $0x1c0] sm:$0xff]
        %v325 = vld [vmem:[#allocation5 + $0x1c8] sm:$0xff]
        %v326 = vld [vmem:[#allocation5 + $0x1d0] sm:$0xff]
        %v327 = vld [vmem:[#allocation5 + $0x1d8] sm:$0xff]
        %v328 = vld [vmem:[#allocation5 + $0x1e0] sm:$0xff]
        %v329 = vld [vmem:[#allocation5 + $0x1e8] sm:$0xff]
        %v330 = vld [vmem:[#allocation5 + $0x1f0] sm:$0xff]
        %v331 = vld [vmem:[#allocation5 + $0x1f8] sm:$0xff]
        %332 = vmatpush.msra.mxu0 %v328
        %333 = vmatpush.msra.mxu0 %v324
        %334 = vmatpush.msra.mxu0 %v320
        %335 = vmatpush.msra.mxu0 %v316
        %336 = vmatpush.msra.mxu0 %v312
        %337 = vmatpush.msra.mxu0 %v308
        %338 = vmatpush.msra.mxu0 %v304
        %339 = vmatpush.msra.mxu0 %v300
        %340 = vmatpush.msra.mxu0 %v296
        %341 = vmatpush.msra.mxu0 %v292
        %342 = vmatpush.msra.mxu0 %v288
        %343 = vmatpush.msra.mxu0 %v284
        %344 = vmatpush.msra.mxu0 %v280
        %345 = vmatpush.msra.mxu0 %v276
        %346 = vmatpush.msra.mxu0 %v272
        %347 = vmatpush.msra.mxu0 %v268
        %348 = vmatmul.f32.gmra.mxu0 %v264
        %v349 = vpop.f32.mrf.mxu0
        %v350 = vadd.f32 0.0, %v349
        %351 = vmatmul.f32.gmra.mxu0 %v265
        %v352 = vpop.f32.mrf.mxu0
        %v353 = vadd.f32 0.0, %v352
        %354 = vmatmul.f32.gmra.mxu0 %v266
        %v355 = vpop.f32.mrf.mxu0
        %v356 = vadd.f32 0.0, %v355
        %357 = vmatmul.f32.gmra.mxu0 %v267
        %v358 = vpop.f32.mrf.mxu0
        %v359 = vadd.f32 0.0, %v358
        %360 = vdwg.mxu0
        %361 = vmatpush.msra.mxu0 %v329
        %362 = vmatpush.msra.mxu0 %v325
        %363 = vmatpush.msra.mxu0 %v321
        %364 = vmatpush.msra.mxu0 %v317
        %365 = vmatpush.msra.mxu0 %v313
        %366 = vmatpush.msra.mxu0 %v309
        %367 = vmatpush.msra.mxu0 %v305
        %368 = vmatpush.msra.mxu0 %v301
        %369 = vmatpush.msra.mxu0 %v297
        %370 = vmatpush.msra.mxu0 %v293
        %371 = vmatpush.msra.mxu0 %v289
        %372 = vmatpush.msra.mxu0 %v285
        %373 = vmatpush.msra.mxu0 %v281
        %374 = vmatpush.msra.mxu0 %v277
        %375 = vmatpush.msra.mxu0 %v273
        %376 = vmatpush.msra.mxu0 %v269
        %377 = vmatmul.f32.gmra.mxu0 %v264
        %v378 = vpop.f32.mrf.mxu0
        %v379 = vadd.f32 0.0, %v378
        %380 = vmatmul.f32.gmra.mxu0 %v265
        %v381 = vpop.f32.mrf.mxu0
        %v382 = vadd.f32 0.0, %v381
        %383 = vmatmul.f32.gmra.mxu0 %v266
        %v384 = vpop.f32.mrf.mxu0
        %v385 = vadd.f32 0.0, %v384
        %386 = vmatmul.f32.gmra.mxu0 %v267
        %v387 = vpop.f32.mrf.mxu0
        %v388 = vadd.f32 0.0, %v387
        %389 = vdwg.mxu0
        %390 = vmatpush.msra.mxu0 %v330
        %391 = vmatpush.msra.mxu0 %v326
        %392 = vmatpush.msra.mxu0 %v322
        %393 = vmatpush.msra.mxu0 %v318
        %394 = vmatpush.msra.mxu0 %v314
        %395 = vmatpush.msra.mxu0 %v310
        %396 = vmatpush.msra.mxu0 %v306
        %397 = vmatpush.msra.mxu0 %v302
        %398 = vmatpush.msra.mxu0 %v298
        %399 = vmatpush.msra.mxu0 %v294
        %400 = vmatpush.msra.mxu0 %v290
        %401 = vmatpush.msra.mxu0 %v286
        %402 = vmatpush.msra.mxu0 %v282
        %403 = vmatpush.msra.mxu0 %v278
        %404 = vmatpush.msra.mxu0 %v274
        %405 = vmatpush.msra.mxu0 %v270
        %406 = vmatmul.f32.gmra.mxu0 %v264
        %v407 = vpop.f32.mrf.mxu0
        %v408 = vadd.f32 0.0, %v407
        %409 = vmatmul.f32.gmra.mxu0 %v265
        %v410 = vpop.f32.mrf.mxu0
        %v411 = vadd.f32 0.0, %v410
        %412 = vmatmul.f32.gmra.mxu0 %v266
        %v413 = vpop.f32.mrf.mxu0
        %v414 = vadd.f32 0.0, %v413
        %415 = vmatmul.f32.gmra.mxu0 %v267
        %v416 = vpop.f32.mrf.mxu0
        %v417 = vadd.f32 0.0, %v416
        %418 = vdwg.mxu0
        %419 = vmatpush.msra.mxu0 %v331
        %420 = vmatpush.msra.mxu0 %v327
        %421 = vmatpush.msra.mxu0 %v323
        %422 = vmatpush.msra.mxu0 %v319
        %423 = vmatpush.msra.mxu0 %v315
        %424 = vmatpush.msra.mxu0 %v311
        %425 = vmatpush.msra.mxu0 %v307
        %426 = vmatpush.msra.mxu0 %v303
        %427 = vmatpush.msra.mxu0 %v299
        %428 = vmatpush.msra.mxu0 %v295
        %429 = vmatpush.msra.mxu0 %v291
        %430 = vmatpush.msra.mxu0 %v287
        %431 = vmatpush.msra.mxu0 %v283
        %432 = vmatpush.msra.mxu0 %v279
        %433 = vmatpush.msra.mxu0 %v275
        %434 = vmatpush.msra.mxu0 %v271
        %435 = vmatmul.f32.gmra.mxu0 %v264
        %v436 = vpop.f32.mrf.mxu0
        %v437 = vadd.f32 0.0, %v436
        %438 = vmatmul.f32.gmra.mxu0 %v265
        %v439 = vpop.f32.mrf.mxu0
        %v440 = vadd.f32 0.0, %v439
        %441 = vmatmul.f32.gmra.mxu0 %v266
        %v442 = vpop.f32.mrf.mxu0
        %v443 = vadd.f32 0.0, %v442
        %444 = vmatmul.f32.gmra.mxu0 %v267
        %v445 = vpop.f32.mrf.mxu0
        %v446 = vadd.f32 0.0, %v445
        %447 = vdwg.mxu0
        %v448 = vxor.u32 %v350, 2147483648
        %v449 = vxor.u32 %v379, 2147483648
        %v450 = vxor.u32 %v353, 2147483648
        %v451 = vxor.u32 %v382, 2147483648
        %v452 = vxor.u32 %v356, 2147483648
        %v453 = vxor.u32 %v385, 2147483648
        %v454 = vxor.u32 %v359, 2147483648
        %v455 = vxor.u32 %v388, 2147483648
        %v456 = vmul.f32 %v448, 1.442695
        %v457 = vpow.pop %v456
        %v458 = vmul.f32 %v449, 1.442695
        %v459 = vpow.pop %v458
        %v460 = vmul.f32 %v450, 1.442695
        %v461 = vpow.pop %v460
        %v462 = vmul.f32 %v451, 1.442695
        %v463 = vpow.pop %v462
        %v464 = vmul.f32 %v452, 1.442695
        %v465 = vpow.pop %v464
        %v466 = vmul.f32 %v453, 1.442695
        %v467 = vpow.pop %v466
        %v468 = vmul.f32 %v454, 1.442695
        %v469 = vpow.pop %v468
        %v470 = vmul.f32 %v455, 1.442695
        %v471 = vpow.pop %v470
        %v472 = vadd.f32 %v457, 1.0
        %v473 = vadd.f32 %v459, 1.0
        %v474 = vadd.f32 %v461, 1.0
        %v475 = vadd.f32 %v463, 1.0
        %v476 = vadd.f32 %v465, 1.0
        %v477 = vadd.f32 %v467, 1.0
        %v478 = vadd.f32 %v469, 1.0
        %v479 = vadd.f32 %v471, 1.0
        %v480 = vrcp.pop %v472
        %v481 = vmul.f32 %v472, %v480
        %v482 = vsub.f32 1.0, %v481
        %v483 = vmul.f32 %v480, %v482
        %v484 = vadd.f32 %v480, %v483
        %vm485 = vweird.f32 %v472
        %vm486 = vweird.f32 %v480
        %vm487 = vmor %vm485, %vm486
        %v488 = vsel %vm487, %v480, %v484
        %v489 = vand.u32 2147483647, %v472
        %vm490 = vcmp.eq.f32.partialorder %v489, 8.507059e+37
        %v491 = vand.u32 %v472, 2147483648
        %v492 = vor.u32 1.1754944e-38, %v491
        %v493 = vsel %vm490, %v492, %v488
        %v494 = vmul.f32 1.0, %v493
        %v495 = vrcp.pop %v473
        %v496 = vmul.f32 %v473, %v495
        %v497 = vsub.f32 1.0, %v496
        %v498 = vmul.f32 %v495, %v497
        %v499 = vadd.f32 %v495, %v498
        %vm500 = vweird.f32 %v473
        %vm501 = vweird.f32 %v495
        %vm502 = vmor %vm500, %vm501
        %v503 = vsel %vm502, %v495, %v499
        %v504 = vand.u32 2147483647, %v473
        %vm505 = vcmp.eq.f32.partialorder %v504, 8.507059e+37
        %v506 = vand.u32 %v473, 2147483648
        %v507 = vor.u32 1.1754944e-38, %v506
        %v508 = vsel %vm505, %v507, %v503
        %v509 = vmul.f32 1.0, %v508
        %v510 = vrcp.pop %v474
        %v511 = vmul.f32 %v474, %v510
        %v512 = vsub.f32 1.0, %v511
        %v513 = vmul.f32 %v510, %v512
        %v514 = vadd.f32 %v510, %v513
        %vm515 = vweird.f32 %v474
        %vm516 = vweird.f32 %v510
        %vm517 = vmor %vm515, %vm516
        %v518 = vsel %vm517, %v510, %v514
        %v519 = vand.u32 2147483647, %v474
        %vm520 = vcmp.eq.f32.partialorder %v519, 8.507059e+37
        %v521 = vand.u32 %v474, 2147483648
        %v522 = vor.u32 1.1754944e-38, %v521
        %v523 = vsel %vm520, %v522, %v518
        %v524 = vmul.f32 1.0, %v523
        %v525 = vrcp.pop %v475
        %v526 = vmul.f32 %v475, %v525
        %v527 = vsub.f32 1.0, %v526
        %v528 = vmul.f32 %v525, %v527
        %v529 = vadd.f32 %v525, %v528
        %vm530 = vweird.f32 %v475
        %vm531 = vweird.f32 %v525
        %vm532 = vmor %vm530, %vm531
        %v533 = vsel %vm532, %v525, %v529
        %v534 = vand.u32 2147483647, %v475
        %vm535 = vcmp.eq.f32.partialorder %v534, 8.507059e+37
        %v536 = vand.u32 %v475, 2147483648
        %v537 = vor.u32 1.1754944e-38, %v536
        %v538 = vsel %vm535, %v537, %v533
        %v539 = vmul.f32 1.0, %v538
        %v540 = vrcp.pop %v476
        %v541 = vmul.f32 %v476, %v540
        %v542 = vsub.f32 1.0, %v541
        %v543 = vmul.f32 %v540, %v542
        %v544 = vadd.f32 %v540, %v543
        %vm545 = vweird.f32 %v476
        %vm546 = vweird.f32 %v540
        %vm547 = vmor %vm545, %vm546
        %v548 = vsel %vm547, %v540, %v544
        %v549 = vand.u32 2147483647, %v476
        %vm550 = vcmp.eq.f32.partialorder %v549, 8.507059e+37
        %v551 = vand.u32 %v476, 2147483648
        %v552 = vor.u32 1.1754944e-38, %v551
        %v553 = vsel %vm550, %v552, %v548
        %v554 = vmul.f32 1.0, %v553
        %v555 = vrcp.pop %v477
        %v556 = vmul.f32 %v477, %v555
        %v557 = vsub.f32 1.0, %v556
        %v558 = vmul.f32 %v555, %v557
        %v559 = vadd.f32 %v555, %v558
        %vm560 = vweird.f32 %v477
        %vm561 = vweird.f32 %v555
        %vm562 = vmor %vm560, %vm561
        %v563 = vsel %vm562, %v555, %v559
        %v564 = vand.u32 2147483647, %v477
        %vm565 = vcmp.eq.f32.partialorder %v564, 8.507059e+37
        %v566 = vand.u32 %v477, 2147483648
        %v567 = vor.u32 1.1754944e-38, %v566
        %v568 = vsel %vm565, %v567, %v563
        %v569 = vmul.f32 1.0, %v568
        %v570 = vrcp.pop %v478
        %v571 = vmul.f32 %v478, %v570
        %v572 = vsub.f32 1.0, %v571
        %v573 = vmul.f32 %v570, %v572
        %v574 = vadd.f32 %v570, %v573
        %vm575 = vweird.f32 %v478
        %vm576 = vweird.f32 %v570
        %vm577 = vmor %vm575, %vm576
        %v578 = vsel %vm577, %v570, %v574
        %v579 = vand.u32 2147483647, %v478
        %vm580 = vcmp.eq.f32.partialorder %v579, 8.507059e+37
        %v581 = vand.u32 %v478, 2147483648
        %v582 = vor.u32 1.1754944e-38, %v581
        %v583 = vsel %vm580, %v582, %v578
        %v584 = vmul.f32 1.0, %v583
        %v585 = vrcp.pop %v479
        %v586 = vmul.f32 %v479, %v585
        %v587 = vsub.f32 1.0, %v586
        %v588 = vmul.f32 %v585, %v587
        %v589 = vadd.f32 %v585, %v588
        %vm590 = vweird.f32 %v479
        %vm591 = vweird.f32 %v585
        %vm592 = vmor %vm590, %vm591
        %v593 = vsel %vm592, %v585, %v589
        %v594 = vand.u32 2147483647, %v479
        %vm595 = vcmp.eq.f32.partialorder %v594, 8.507059e+37
        %v596 = vand.u32 %v479, 2147483648
        %v597 = vor.u32 1.1754944e-38, %v596
        %v598 = vsel %vm595, %v597, %v593
        %v599 = vmul.f32 1.0, %v598
        %v600 = vmul.f32 %v350, %v494
        %v601 = vmul.f32 %v379, %v509
        %v602 = vmul.f32 %v353, %v524
        %v603 = vmul.f32 %v382, %v539
        %v604 = vmul.f32 %v356, %v554
        %v605 = vmul.f32 %v385, %v569
        %v606 = vmul.f32 %v359, %v584
        %v607 = vmul.f32 %v388, %v599
        %v608 = vmul.f32 %v600, %v408
        %v609 = vmul.f32 %v601, %v437
        %v610 = vmul.f32 %v602, %v411
        %v611 = vmul.f32 %v603, %v440
        %v612 = vmul.f32 %v604, %v414
        %v613 = vmul.f32 %v605, %v443
        %v614 = vmul.f32 %v606, %v417
        %v615 = vmul.f32 %v607, %v446
        %v616 = vld [vmem:[%s251] sm:$0xff]
        %v617 = vld [vmem:[%s251 + $0x8] sm:$0xff]
        %v618 = vld [vmem:[%s251 + $0x10] sm:$0xff]
        %v619 = vld [vmem:[%s251 + $0x18] sm:$0xff]
        %v620 = vld [vmem:[#allocation7] sm:$0xff]
        %v621 = vld [vmem:[#allocation7 + $0x8] sm:$0xff]
        %v622 = vld [vmem:[#allocation7 + $0x10] sm:$0xff]
        %v623 = vld [vmem:[#allocation7 + $0x18] sm:$0xff]
        %v624 = vld [vmem:[#allocation7 + $0x20] sm:$0xff]
        %v625 = vld [vmem:[#allocation7 + $0x28] sm:$0xff]
        %v626 = vld [vmem:[#allocation7 + $0x30] sm:$0xff]
        %v627 = vld [vmem:[#allocation7 + $0x38] sm:$0xff]
        %v628 = vld [vmem:[#allocation7 + $0x40] sm:$0xff]
        %v629 = vld [vmem:[#allocation7 + $0x48] sm:$0xff]
        %v630 = vld [vmem:[#allocation7 + $0x50] sm:$0xff]
        %v631 = vld [vmem:[#allocation7 + $0x58] sm:$0xff]
        %v632 = vld [vmem:[#allocation7 + $0x60] sm:$0xff]
        %v633 = vld [vmem:[#allocation7 + $0x68] sm:$0xff]
        %v634 = vld [vmem:[#allocation7 + $0x70] sm:$0xff]
        %v635 = vld [vmem:[#allocation7 + $0x78] sm:$0xff]
        %v636 = vld [vmem:[#allocation7 + $0x80] sm:$0xff]
        %v637 = vld [vmem:[#allocation7 + $0x88] sm:$0xff]
        %v638 = vld [vmem:[#allocation7 + $0x90] sm:$0xff]
        %v639 = vld [vmem:[#allocation7 + $0x98] sm:$0xff]
        %v640 = vld [vmem:[#allocation7 + $0xa0] sm:$0xff]
        %v641 = vld [vmem:[#allocation7 + $0xa8] sm:$0xff]
        %v642 = vld [vmem:[#allocation7 + $0xb0] sm:$0xff]
        %v643 = vld [vmem:[#allocation7 + $0xb8] sm:$0xff]
        %v644 = vld [vmem:[#allocation7 + $0xc0] sm:$0xff]
        %v645 = vld [vmem:[#allocation7 + $0xc8] sm:$0xff]
        %v646 = vld [vmem:[#allocation7 + $0xd0] sm:$0xff]
        %v647 = vld [vmem:[#allocation7 + $0xd8] sm:$0xff]
        %v648 = vld [vmem:[#allocation7 + $0xe0] sm:$0xff]
        %v649 = vld [vmem:[#allocation7 + $0xe8] sm:$0xff]
        %v650 = vld [vmem:[#allocation7 + $0xf0] sm:$0xff]
        %v651 = vld [vmem:[#allocation7 + $0xf8] sm:$0xff]
        %652 = vmatpush.msra.mxu0 %v635
        %653 = vmatpush.msra.mxu0 %v634
        %654 = vmatpush.msra.mxu0 %v633
        %655 = vmatpush.msra.mxu0 %v632
        %656 = vmatpush.msra.mxu0 %v631
        %657 = vmatpush.msra.mxu0 %v630
        %658 = vmatpush.msra.mxu0 %v629
        %659 = vmatpush.msra.mxu0 %v628
        %660 = vmatpush.msra.mxu0 %v627
        %661 = vmatpush.msra.mxu0 %v626
        %662 = vmatpush.msra.mxu0 %v625
        %663 = vmatpush.msra.mxu0 %v624
        %664 = vmatpush.msra.mxu0 %v623
        %665 = vmatpush.msra.mxu0 %v622
        %666 = vmatpush.msra.mxu0 %v621
        %667 = vmatpush.msra.mxu0 %v620
        %668 = vmatmul.f32.gmra.mxu0 %v608
        %v669 = vpop.f32.mrf.mxu0
        %v670 = vadd.f32 0.0, %v669
        %671 = vmatmul.f32.gmra.mxu0 %v610
        %v672 = vpop.f32.mrf.mxu0
        %v673 = vadd.f32 0.0, %v672
        %674 = vmatmul.f32.gmra.mxu0 %v612
        %v675 = vpop.f32.mrf.mxu0
        %v676 = vadd.f32 0.0, %v675
        %677 = vmatmul.f32.gmra.mxu0 %v614
        %v678 = vpop.f32.mrf.mxu0
        %v679 = vadd.f32 0.0, %v678
        %680 = vdwg.mxu0
        %681 = vmatpush.msra.mxu0 %v651
        %682 = vmatpush.msra.mxu0 %v650
        %683 = vmatpush.msra.mxu0 %v649
        %684 = vmatpush.msra.mxu0 %v648
        %685 = vmatpush.msra.mxu0 %v647
        %686 = vmatpush.msra.mxu0 %v646
        %687 = vmatpush.msra.mxu0 %v645
        %688 = vmatpush.msra.mxu0 %v644
        %689 = vmatpush.msra.mxu0 %v643
        %690 = vmatpush.msra.mxu0 %v642
        %691 = vmatpush.msra.mxu0 %v641
        %692 = vmatpush.msra.mxu0 %v640
        %693 = vmatpush.msra.mxu0 %v639
        %694 = vmatpush.msra.mxu0 %v638
        %695 = vmatpush.msra.mxu0 %v637
        %696 = vmatpush.msra.mxu0 %v636
        %697 = vmatmul.f32.gmra.mxu0 %v609
        %v698 = vpop.f32.mrf.mxu0
        %v699 = vadd.f32 %v670, %v698
        %700 = vmatmul.f32.gmra.mxu0 %v611
        %v701 = vpop.f32.mrf.mxu0
        %v702 = vadd.f32 %v673, %v701
        %703 = vmatmul.f32.gmra.mxu0 %v613
        %v704 = vpop.f32.mrf.mxu0
        %v705 = vadd.f32 %v676, %v704
        %706 = vmatmul.f32.gmra.mxu0 %v615
        %v707 = vpop.f32.mrf.mxu0
        %v708 = vadd.f32 %v679, %v707
        %709 = vdwg.mxu0
        %v710 = vadd.f32 %v616, %v699
        %v711 = vadd.f32 %v617, %v702
        %v712 = vadd.f32 %v618, %v705
        %v713 = vadd.f32 %v619, %v708
        %714 = vst [vmem:[%s251] sm:$0xff] %v710
        %715 = vst [vmem:[%s251 + $0x8] sm:$0xff] %v711
        %716 = vst [vmem:[%s251 + $0x10] sm:$0xff] %v712
        %717 = vst [vmem:[%s251 + $0x18] sm:$0xff] %v713
        %s718 = sand.u32 %s119, 1
        %s719 = scalar_lea.sflag [#allocation4], %s718
        %s720 = sand.u32 %s119, 1
        %s721 = smul.addr %s720, 32
        %s722 = scalar_lea.vmem [#allocation8], %s721
        // Predicated region
        $region49: #{tpu_custom_call.1} parent=31 // pred_check
          %p723 = pneg %p129
        $region50: #{tpu_custom_call.1} parent=31 // pred_check_branch
          %725 = sbr.rel (%p723) target = $region52
        $region51: #{tpu_custom_call.1} parent=31 // pred_region
          %s726 = smul.u32 4, %s25
          %728 = vsyncadd %s719, 0
          %s729 = smul.addr %s726, 8
          %s730 = scalar_lea.hbm %s3, %s729
          %s731 = sshll.u32 %s722, 4
          %s732 = int_to_ptr.vmem [resolvable:$true] %s731
          %s733 = sshll.u32 %s730, 4
          %s734 = int_to_ptr.hbm [resolvable:$true] %s733
          %739 = dma.vmem_to_hbm [thread:$0]  %s732, 512, %s734, %s719, 128, 128, 8
        $region52: #{tpu_custom_call.1} parent=31 // pred_fallthru
          _
      $region32: #{tpu_custom_call.1} parent=5 // pred_fallthru
        _
      %p740 = scmp.le.s32.totalorder 2, %s16
      // Predicated region
      $region53: #{tpu_custom_call.1} parent=5 // pred_check
        %p741 = pneg %p740
      $region54: #{tpu_custom_call.1} parent=5 // pred_check_branch
        %743 = sbr.rel (%p741) target = $region56
      $region55: #{tpu_custom_call.1} parent=5 // pred_region
        %s744 = ssub.s32 %s16, 2
        // Predicated region
        $region57: #{tpu_custom_call.1} parent=55 // pred_check
          %p745 = pneg %p135
        $region58: #{tpu_custom_call.1} parent=55 // pred_check_branch
          %747 = sbr.rel (%p745) target = $region60
        $region59: #{tpu_custom_call.1} parent=55 // pred_region
          %s748 = sand.u32 %s120, 1
          %s749 = scalar_lea.sflag [#allocation4], %s748
          %s750 = sand.u32 %s120, 1
          %s751 = smul.addr %s750, 32
          %s752 = scalar_lea.vmem [#allocation8], %s751
          %754 = dma.done %s749, 512
        $region60: #{tpu_custom_call.1} parent=55 // pred_fallthru
          _
      $region56: #{tpu_custom_call.1} parent=5 // pred_fallthru
        _
    $region6: #{tpu_custom_call.1} parent=1 // loop_footer
      %s20 = sadd.s32 1, %s16
    $region7: #{tpu_custom_call.1} parent=1 // loop_footer_branch
      %15 = sbr.rel target = $region3
    $region8: #{tpu_custom_call.1} parent=1 // loop_exit
      _
    %755 = vsyncpa [#allocation3], 1
    %s756 = scalar_lea.sflag [#allocation3], 1
    %757 = vsyncpa %s756, 1
    %758 = vsyncpa [#allocation6], 1
    %759 = vsyncpa [#allocation4], 1
    %s760 = scalar_lea.sflag [#allocation4], 1
    %761 = vsyncpa %s760, 1

</llo_original>
